<compile_context>
chip_gen: v5e
topology: v5e:2x2
jax: 0.10.0
libtpu: 0.0.40
codegen_flags: <defaults>
</compile_context>

<pallas_src>
import functools
import math

import jax
import jax.numpy as jnp
from jax.experimental import pallas as pl
from jax.experimental.pallas import tpu as pltpu


# ----------------------------------------------------------------------------- kernels
def _add_pos_kernel_flat(x_ref, pe_ref, o_ref, *, batch: int):
    """Fast path.  x_ref/o_ref: (TS, B*E) flattened rows; pe_ref: (TS, E)."""
    pe = pe_ref[...].astype(jnp.float32)                       # (TS, E)
    if batch > 1:
        # Batch broadcast == repeat along the lane axis (each flattened row is
        # [b=0 | b=1 | ...] chunks of E lanes).  E % 128 == 0 on this path, so
        # every piece is lane-tile aligned.
        pe = jnp.concatenate([pe] * batch, axis=-1)            # (TS, B*E)
    o_ref[...] = (x_ref[...].astype(jnp.float32) + pe).astype(o_ref.dtype)


def _add_pos_kernel_3d(x_ref, pe_ref, o_ref):
    """Fallback path.  x_ref/o_ref: (TS, B, E); pe_ref: (TS, 1, E) (broadcast over B)."""
    o_ref[...] = (x_ref[...].astype(jnp.float32)
                  + pe_ref[...].astype(jnp.float32)).astype(o_ref.dtype)


# ----------------------------------------------------------------------------- pe table
def make_pos_embedding(emb_size: int, maxlen: int = 5000) -> jnp.ndarray:
    """Sinusoidal positional-encoding table, shape (maxlen, 1, emb), float32."""
    den = jnp.exp(-jnp.arange(0, emb_size, 2, dtype=jnp.float32)
                  * math.log(10000.0) / emb_size)                      # (emb/2,)
    pos = jnp.arange(0, maxlen, dtype=jnp.float32).reshape(maxlen, 1)  # (maxlen, 1)
    pe = jnp.zeros((maxlen, emb_size), dtype=jnp.float32)
    pe = pe.at[:, 0::2].set(jnp.sin(pos * den))
    pe = pe.at[:, 1::2].set(jnp.cos(pos * den))
    return pe[:, None, :]                                              # (maxlen, 1, emb)


# ----------------------------------------------------------------------------- tiling
def _default_peak_budget_bytes() -> int:
    """Target VMEM peak for auto tile sizing: ~1/4 of physical VMEM, clamped."""
    try:
        cap = int(pltpu.get_tpu_info().vmem_capacity_bytes)
        return max(8 << 20, min(cap // 4, 32 << 20))
    except Exception:  # conservative fallback if the query is unavailable
        return 12 << 20


def _pick_block_s(S: int, per_row_peak_bytes: int, peak_budget_bytes: int) -> int:
    """Largest seq tile (multiple of 8, or the full S) whose VMEM peak fits budget."""
    cap = max(1, peak_budget_bytes // max(1, per_row_peak_bytes))
    if cap >= S:
        return S
    return min(S, max(8, (cap // 8) * 8))


# ----------------------------------------------------------------------------- wrapper
def positional_encoding(token_embedding: jnp.ndarray,
                        pos_embedding: jnp.ndarray,
                        *,
                        block_s: int | None = None,
                        vmem_peak_budget_bytes: int | None = None) -> jnp.ndarray:
    """token_embedding: (S, B, E); pos_embedding: (maxlen, 1, E) module buffer."""
    S, B, E = token_embedding.shape
    maxlen = pos_embedding.shape[0]
    if S > maxlen:
        raise ValueError(f"sequence length {S} exceeds maxlen {maxlen}")

    x_dtype = token_embedding.dtype
    x_item = jnp.dtype(x_dtype).itemsize
    pe_item = jnp.dtype(pos_embedding.dtype).itemsize

    flat = (E % 128) == 0  # lane-dense flattened fast path

    # Real VMEM-peak accounting, per row of the sequence axis:
    #   2x double-buffered input + 2x double-buffered output + 2x pe
    #   + ~2 x-rows of in-kernel compute temporaries.
    if flat:
        x_row_vmem = B * E * x_item
        pe_row_vmem = E * pe_item
    else:
        sub = max(1, 32 // x_item)                       # 8/16/32 sublane tile rows
        x_row_vmem = ((B + sub - 1) // sub) * sub * E * x_item   # padded (B, E) slab
        pe_sub = max(1, 32 // pe_item)
        pe_row_vmem = pe_sub * E * pe_item               # (1, E) slab pads to (pe_sub, E)
    per_row_peak = 6 * x_row_vmem + 2 * pe_row_vmem

    if vmem_peak_budget_bytes is None:
        vmem_peak_budget_bytes = _default_peak_budget_bytes()
    if block_s is None:
        block_s = _pick_block_s(S, per_row_peak, vmem_peak_budget_bytes)
    block_s = min(block_s, S)

    grid = (pl.cdiv(S, block_s),)  # ragged last block is masked by Pallas

    est_peak = block_s * per_row_peak + (2 << 20)
    vmem_limit = int(max(16 << 20, min(est_peak, 64 << 20)))

    compiler_params = pltpu.CompilerParams(
        # Independent tiles: allow megacore sharding on multi-TC parts.
        dimension_semantics=("parallel",),
        vmem_limit_bytes=vmem_limit,
    )

    if flat:
        x2 = token_embedding.reshape(S, B * E)     # free row-major view
        pe2 = pos_embedding.reshape(maxlen, E)     # free view (squeezes the size-1 dim)
        out2 = pl.pallas_call(
            functools.partial(_add_pos_kernel_flat, batch=B),
            out_shape=jax.ShapeDtypeStruct((S, B * E), x_dtype),
            grid_spec=pl.GridSpec(
                grid=grid,
                in_specs=[
                    pl.BlockSpec((block_s, B * E), lambda si: (si, 0)),
                    pl.BlockSpec((block_s, E), lambda si: (si, 0)),
                ],
                out_specs=pl.BlockSpec((block_s, B * E), lambda si: (si, 0)),
            ),
            compiler_params=compiler_params,
        )(x2, pe2)
        return out2.reshape(S, B, E)

    # Fallback 3D layout (E not a multiple of 128); pe slice/cast still fused
    # via the index_map + in-kernel cast.
    return pl.pallas_call(
        _add_pos_kernel_3d,
        out_shape=jax.ShapeDtypeStruct((S, B, E), x_dtype),
        grid_spec=pl.GridSpec(
            grid=grid,
            in_specs=[
                pl.BlockSpec((block_s, B, E), lambda si: (si, 0, 0)),
                pl.BlockSpec((block_s, 1, E), lambda si: (si, 0, 0)),
            ],
            out_specs=pl.BlockSpec((block_s, B, E), lambda si: (si, 0, 0)),
        ),
        compiler_params=compiler_params,
    )(token_embedding, pos_embedding)


def positional_encoding_ref(token_embedding: jnp.ndarray,
                            pos_embedding: jnp.ndarray) -> jnp.ndarray:
    S = token_embedding.shape[0]
    out = token_embedding.astype(jnp.float32) + pos_embedding[:S].astype(jnp.float32)
    return out.astype(token_embedding.dtype)


if __name__ == "__main__":
    key = jax.random.PRNGKey(0)
    k1, k2 = jax.random.split(key)

    # Test 1: lane-dense flattened fast path (B*E = 256), multi-step grid with a
    # ragged final block (S=40, block_s=16 -> grid=(3,), last block masked).
    S, B, E, MAXLEN = 40, 2, 128, 64
    x = jax.random.normal(k1, (S, B, E), dtype=jnp.float32)
    pe = make_pos_embedding(E, MAXLEN)
    out = jax.block_until_ready(positional_encoding(x, pe, block_s=16))
    ref = positional_encoding_ref(x, pe)
    assert out.shape == (S, B, E)
    assert jnp.allclose(out, ref, atol=1e-6), "mismatch vs. reference (E=128 flat path)"

    # Test 2: tiny module-like config (seq=8, batch=2, emb=32) -> 3D fallback path,
    # auto tiling (single full-extent block).
    S2, B2, E2, MAXLEN2 = 8, 2, 32, 64
    x2 = jax.random.normal(k2, (S2, B2, E2), dtype=jnp.float32)
    pe2 = make_pos_embedding(E2, MAXLEN2)
    out2 = jax.block_until_ready(positional_encoding(x2, pe2))
    ref2 = positional_encoding_ref(x2, pe2)
    assert out2.shape == (S2, B2, E2)
    assert jnp.allclose(out2, ref2, atol=1e-6), "mismatch vs. reference (E=32 3D path)"

    print("KERNEL_OK")
</pallas_src>

<mosaic_0001>
module attributes {stable_mosaic.version = 11 : i64} {
  func.func @_add_pos_kernel_flat(%arg0: i32, %arg1: memref<16x256xf32, #tpu.memory_space<vmem>>, %arg2: memref<16x128xf32, #tpu.memory_space<vmem>>, %arg3: memref<16x256xf32, #tpu.memory_space<vmem>>) attributes {dimension_semantics = [#tpu.dimension_semantics<parallel>], iteration_bounds = array<i64: 3>, scalar_prefetch = 0 : i64, scratch_operands = 0 : i64, tpu.core_type = #tpu.core_type<tc>, window_params = [{transform_indices = @transform_0, window_bounds = array<i64: 16, 256>}, {transform_indices = @transform_1, window_bounds = array<i64: 16, 128>}, {transform_indices = @transform_2, window_bounds = array<i64: 16, 256>}]} {
    %c0 = arith.constant 0 : index
    %c0_0 = arith.constant 0 : index
    %0 = vector.load %arg2[%c0, %c0_0] : memref<16x128xf32, #tpu.memory_space<vmem>>, vector<16x128xf32>
    %1 = tpu.concatenate %0, %0 in 1 : vector<16x128xf32>, vector<16x128xf32> -> vector<16x256xf32>
    %c0_1 = arith.constant 0 : index
    %c0_2 = arith.constant 0 : index
    %2 = vector.load %arg1[%c0_1, %c0_2] : memref<16x256xf32, #tpu.memory_space<vmem>>, vector<16x256xf32>
    %3 = arith.addf %2, %1 : vector<16x256xf32>
    %c0_3 = arith.constant 0 : index
    %c0_4 = arith.constant 0 : index
    %4 = vector.load %arg3[%c0_3, %c0_4] : memref<16x256xf32, #tpu.memory_space<vmem>>, vector<16x256xf32>
    tpu.vector_store %arg3[%c0_3, %c0_4], %3 {strides = array<i32>} : memref<16x256xf32, #tpu.memory_space<vmem>>, vector<16x256xf32>,
    return
  }
  func.func @transform_0(%arg0: i32) -> (i32, i32) {
    %c0_i32 = arith.constant 0 : i32
    %c0_i32_0 = arith.constant 0 : i32
    return %arg0, %c0_i32 : i32, i32
  }
  func.func @transform_1(%arg0: i32) -> (i32, i32) {
    %c0_i32 = arith.constant 0 : i32
    %c0_i32_0 = arith.constant 0 : i32
    return %arg0, %c0_i32 : i32, i32
  }
  func.func @transform_2(%arg0: i32) -> (i32, i32) {
    %c0_i32 = arith.constant 0 : i32
    %c0_i32_0 = arith.constant 0 : i32
    return %arg0, %c0_i32 : i32, i32
  }
}

</mosaic_0001>

<llo_original>
// kernel: tpu_custom_call.1
$region0: #{tpu_custom_call.1}
  #allocation0 [shape = 'u32[]', space=smem, size = 0x4, offset = 0x4, fixed_abs, tag = 'smem constant byte address 0x4 - core index']
  #allocation1 [shape = 'u32[72,128]{1,0:T(1,128)}', space=vmem, size = 0x9000, scoped, tag = 'internal scratch']
  %s0 = inlined_call_operand.hbm [shape: f32[40,256], index: 0, kind: input, shape index: {}]
  %s1 = inlined_call_operand.hbm [shape: f32[64,128], index: 1, kind: input, shape index: {}]
  %s2 = inlined_call_operand.hbm [shape: f32[40,256], index: 2, kind: output, shape index: {}]
  %s3 = sld [smem:[#allocation0]]
  $region49: #{tpu_custom_call.1} parent=0
    _
  %s5 = ssub.s32 1, %s3
  %s6 = scalar_select 0, %s5, %s3
  $region1: #{tpu_custom_call.1} parent=0
    #allocation2 [shape = 'u8[32768]{0}', space=vmem, size = 0x8000, scoped, tag = 'input window, operand 0']
    #allocation3 [shape = 's32[2]{0}', space=sflag, size = 0x8, scoped, tag = 'scoped memory for tpu_custom_call.1']
    #allocation4 [shape = 's32[2]{0}', space=sflag, size = 0x8, scoped, tag = 'scoped memory for tpu_custom_call.1']
    #allocation5 [shape = 'u8[16384]{0}', space=vmem, size = 0x4000, scoped, tag = 'input window, operand 1']
    #allocation6 [shape = 's32[2]{0}', space=sflag, size = 0x8, scoped, tag = 'scoped memory for tpu_custom_call.1']
    #allocation7 [shape = 'u8[32768]{0}', space=vmem, size = 0x8000, scoped, tag = 'output window, operand 0']
    %7 = vsyncpa [#allocation3], 0
    %s8 = scalar_lea.sflag [#allocation3], 1
    %9 = vsyncpa %s8, 0
    %10 = vsyncpa [#allocation6], 0
    %s11 = scalar_lea.sflag [#allocation6], 1
    %12 = vsyncpa %s11, 0
    %13 = vsyncpa [#allocation4], 0
    %s14 = scalar_lea.sflag [#allocation4], 1
    %15 = vsyncpa %s14, 0
    loop: start=0, step=1, limit=5
    $region2: #{tpu_custom_call.1} parent=1 // loop_pre_header
      _
    $region3: #{tpu_custom_call.1} parent=1 // loop_header
      %s17 = sphi 0, %s21
      %p18 = scmp.ge.s32.totalorder %s17, 5
      %s27 = sphi 0, %s29
      %s30 = sphi 0, %s27
      %s31 = sphi 0, %s30
      %s47 = sphi 0, %s31
      %s53 = sphi 0, %s55
      %s56 = sphi 0, %s53
      %s57 = sphi 0, %s56
      %s73 = sphi 0, %s57
      %s79 = sphi 0, %s81
      %s82 = sphi 0, %s79
      %s83 = sphi 0, %s82
      %s99 = sphi 0, %s83
    $region4: #{tpu_custom_call.1} parent=1 // loop_header_branch
      %20 = sbr.rel (%p18) target = $region8
    $region5: #{tpu_custom_call.1} parent=1 // loop_body
      %s22 = ssub.s32 %s17, 1
      %s23 = ssub.s32 %s17, 2
      %s24 = sadd.s32 %s17, 1
      %s25 = ssub.s32 %s17, %s24
      %p26 = scmp.eq.s32.totalorder %s25, 0
      %s28 = sadd.s32 %s27, 1
      %s29 = scalar_select %p26, %s27, %s28
      %p32 = pneg %p26
      %p33 = scmp.eq.s32.totalorder %s17, 2
      %p34 = por %p32, %p33
      %p35 = scmp.ne.s32.totalorder %s27, %s30
      %p36 = scmp.eq.s32.totalorder %s17, 0
      %p37 = por %p35, %p36
      %p38 = scmp.ne.s32.totalorder %s27, %s30
      %p39 = scmp.eq.s32.totalorder %s22, 2
      %p40 = por %p38, %p39
      %p41 = scmp.ne.s32.totalorder %s30, %s31
      %p42 = scmp.eq.s32.totalorder %s22, 0
      %p43 = por %p41, %p42
      %p44 = scmp.ne.s32.totalorder %s30, %s31
      %p45 = scmp.eq.s32.totalorder %s23, 2
      %p46 = por %p44, %p45
      %p48 = scmp.ne.s32.totalorder %s31, %s47
      %p49 = scmp.eq.s32.totalorder %s23, 0
      %p50 = por %p48, %p49
      %s51 = ssub.s32 %s17, %s24
      %p52 = scmp.eq.s32.totalorder %s51, 0
      %s54 = sadd.s32 %s53, 1
      %s55 = scalar_select %p52, %s53, %s54
      %p58 = pneg %p52
      %p59 = scmp.eq.s32.totalorder %s17, 2
      %p60 = por %p58, %p59
      %p61 = scmp.ne.s32.totalorder %s53, %s56
      %p62 = scmp.eq.s32.totalorder %s17, 0
      %p63 = por %p61, %p62
      %p64 = scmp.ne.s32.totalorder %s53, %s56
      %p65 = scmp.eq.s32.totalorder %s22, 2
      %p66 = por %p64, %p65
      %p67 = scmp.ne.s32.totalorder %s56, %s57
      %p68 = scmp.eq.s32.totalorder %s22, 0
      %p69 = por %p67, %p68
      %p70 = scmp.ne.s32.totalorder %s56, %s57
      %p71 = scmp.eq.s32.totalorder %s23, 2
      %p72 = por %p70, %p71
      %p74 = scmp.ne.s32.totalorder %s57, %s73
      %p75 = scmp.eq.s32.totalorder %s23, 0
      %p76 = por %p74, %p75
      %s77 = ssub.s32 %s17, %s24
      %p78 = scmp.eq.s32.totalorder %s77, 0
      %s80 = sadd.s32 %s79, 1
      %s81 = scalar_select %p78, %s79, %s80
      %p84 = pneg %p78
      %p85 = scmp.eq.s32.totalorder %s17, 2
      %p86 = por %p84, %p85
      %p87 = scmp.ne.s32.totalorder %s79, %s82
      %p88 = scmp.eq.s32.totalorder %s17, 0
      %p89 = por %p87, %p88
      %p90 = scmp.ne.s32.totalorder %s79, %s82
      %p91 = scmp.eq.s32.totalorder %s22, 2
      %p92 = por %p90, %p91
      %p93 = scmp.ne.s32.totalorder %s82, %s83
      %p94 = scmp.eq.s32.totalorder %s22, 0
      %p95 = por %p93, %p94
      %p96 = scmp.ne.s32.totalorder %s82, %s83
      %p97 = scmp.eq.s32.totalorder %s23, 2
      %p98 = por %p96, %p97
      %p100 = scmp.ne.s32.totalorder %s83, %s99
      %p101 = scmp.eq.s32.totalorder %s23, 0
      %p102 = por %p100, %p101
      %p103 = scmp.le.s32.totalorder 1, %s17
      %p104 = scmp.lt.s32.totalorder %s17, 4
      %p105 = pnand %p103, %p104
      %p106 = pneg %p105
      // Predicated region
      $region9: #{tpu_custom_call.1} parent=5 // pred_check
        _
      $region10: #{tpu_custom_call.1} parent=5 // pred_check_branch
        %108 = sbr.rel (%p105) target = $region12
      $region11: #{tpu_custom_call.1} parent=5 // pred_region
        %s109 = ssub.s32 %s17, 1
      $region12: #{tpu_custom_call.1} parent=5 // pred_fallthru
        _
      %p110 = scmp.lt.s32.totalorder %s17, 3
      // Predicated region
      $region13: #{tpu_custom_call.1} parent=5 // pred_check
        %p111 = pneg %p110
      $region14: #{tpu_custom_call.1} parent=5 // pred_check_branch
        %113 = sbr.rel (%p111) target = $region16
      $region15: #{tpu_custom_call.1} parent=5 // pred_region
        // Predicated region
        $region17: #{tpu_custom_call.1} parent=15 // pred_check
          %p114 = pneg %p37
        $region18: #{tpu_custom_call.1} parent=15 // pred_check_branch
          %116 = sbr.rel (%p114) target = $region20
        $region19: #{tpu_custom_call.1} parent=15 // pred_region
          %s117 = sand.u32 %s27, 1
          %s118 = scalar_lea.sflag [#allocation3], %s117
          %s119 = sand.u32 %s27, 1
          %s120 = smul.addr %s119, 32
          %s121 = scalar_lea.vmem [#allocation2], %s120
          %s122 = smul.u32 2, %s17
          %s123 = ssub.s32 5, %s122
          %p124 = scmp.lt.s32.totalorder %s123, 2
          %s125 = scalar_select %p124, %s123, 2
          %s126 = smul.u32 8, %s125
          %s127 = smul.u32 %s126, 2
          %s128 = ssub.s32 32, %s127
          %s129 = sshll.u32 %s128, 4
          %130 = vsyncadd %s118, %s129
          %p131 = scmp.ne.s32.totalorder 0, %s127
          %s132 = smul.addr %s122, 2
          %s133 = smul.addr %s132, 8
          %s134 = scalar_lea.hbm %s0, %s133
          %s135 = smul.u32 16, %s125
          %s136 = sshll.u32 %s134, 4
          %s137 = int_to_ptr.hbm [resolvable:$true] %s136
          %s138 = sshll.u32 %s121, 4
          %s139 = int_to_ptr.vmem [resolvable:$true] %s138
          %s140 = sshll.u32 %s135, 4
          %144 = dma.hbm_to_vmem [thread:$0]  (%p131), %s137, %s140, %s139, %s118, 256, 256, 16
        $region20: #{tpu_custom_call.1} parent=15 // pred_fallthru
          _
        // Predicated region
        $region21: #{tpu_custom_call.1} parent=15 // pred_check
          %p145 = pneg %p63
        $region22: #{tpu_custom_call.1} parent=15 // pred_check_branch
          %147 = sbr.rel (%p145) target = $region24
        $region23: #{tpu_custom_call.1} parent=15 // pred_region
          %s148 = sand.u32 %s53, 1
          %s149 = scalar_lea.sflag [#allocation6], %s148
          %s150 = sand.u32 %s53, 1
          %s151 = smul.addr %s150, 16
          %s152 = scalar_lea.vmem [#allocation5], %s151
          %s153 = smul.u32 2, %s17
          %155 = vsyncadd %s149, 0
          %s156 = smul.addr %s153, 8
          %s157 = scalar_lea.hbm %s1, %s156
          %s158 = sshll.u32 %s157, 4
          %s159 = int_to_ptr.hbm [resolvable:$true] %s158
          %s160 = sshll.u32 %s152, 4
          %s161 = int_to_ptr.vmem [resolvable:$true] %s160
          %166 = dma.hbm_to_vmem [thread:$0]  %s159, 256, %s161, %s149, 128, 128, 8
        $region24: #{tpu_custom_call.1} parent=15 // pred_fallthru
          _
      $region16: #{tpu_custom_call.1} parent=5 // pred_fallthru
        _
      %p167 = scmp.le.s32.totalorder 1, %s17
      %p168 = scmp.lt.s32.totalorder %s17, 4
      %p169 = pnand %p167, %p168
      %p170 = pneg %p169
      // Predicated region
      $region25: #{tpu_custom_call.1} parent=5 // pred_check
        _
      $region26: #{tpu_custom_call.1} parent=5 // pred_check_branch
        %172 = sbr.rel (%p169) target = $region28
      $region27: #{tpu_custom_call.1} parent=5 // pred_region
        %s173 = ssub.s32 %s17, 1
        %s174 = sand.u32 %s30, 1
        %s175 = scalar_lea.sflag [#allocation3], %s174
        %s176 = sand.u32 %s30, 1
        %s177 = smul.addr %s176, 32
        %s178 = scalar_lea.vmem [#allocation2], %s177
        // Predicated region
        $region29: #{tpu_custom_call.1} parent=27 // pred_check
          %p179 = pneg %p43
        $region30: #{tpu_custom_call.1} parent=27 // pred_check_branch
          %181 = sbr.rel (%p179) target = $region32
        $region31: #{tpu_custom_call.1} parent=27 // pred_region
          %183 = dma.done %s175, 512
        $region32: #{tpu_custom_call.1} parent=27 // pred_fallthru
          _
        %s184 = sand.u32 %s56, 1
        %s185 = scalar_lea.sflag [#allocation6], %s184
        %s186 = sand.u32 %s56, 1
        %s187 = smul.addr %s186, 16
        %s188 = scalar_lea.vmem [#allocation5], %s187
        // Predicated region
        $region33: #{tpu_custom_call.1} parent=27 // pred_check
          %p189 = pneg %p69
        $region34: #{tpu_custom_call.1} parent=27 // pred_check_branch
          %191 = sbr.rel (%p189) target = $region36
        $region35: #{tpu_custom_call.1} parent=27 // pred_region
          %193 = dma.done %s185, 256
        $region36: #{tpu_custom_call.1} parent=27 // pred_fallthru
          _
        %s194 = sand.u32 %s30, 1
        %s195 = scalar_lea.sflag [#allocation3], %s194
        %s196 = sand.u32 %s30, 1
        %s197 = smul.addr %s196, 32
        %s198 = scalar_lea.vmem [#allocation2], %s197
        %p199 = pneg %p43
        %p200 = pneg %p40
        %s201 = sand.u32 %s56, 1
        %s202 = scalar_lea.sflag [#allocation6], %s201
        %s203 = sand.u32 %s56, 1
        %s204 = smul.addr %s203, 16
        %s205 = scalar_lea.vmem [#allocation5], %s204
        %p206 = pneg %p69
        %p207 = pneg %p66
        %p208 = pneg %p95
        %p209 = pneg %p92
        %s210 = sand.u32 %s82, 1
        %s211 = scalar_lea.sflag [#allocation4], %s210
        %s212 = sand.u32 %s82, 1
        %s213 = smul.addr %s212, 32
        %s214 = scalar_lea.vmem [#allocation7], %s213
        %s215 = smul.u32 2, %s22
        %s216 = ssub.s32 5, %s215
        %p217 = scmp.lt.s32.totalorder %s216, 2
        %s218 = scalar_select %p217, %s216, 2
        %s219 = smul.u32 8, %s218
        %s220 = smul.u32 %s219, 2
        %s221 = smul.u32 2, %s22
        %s222 = smul.u32 2, %s22
        %s223 = ssub.s32 5, %s222
        %p224 = scmp.lt.s32.totalorder %s223, 2
        %s225 = scalar_select %p224, %s223, 2
        %s226 = smul.u32 8, %s225
        %s227 = smul.u32 %s226, 2
        %v228 = vld [vmem:[%s188] sm:$0xff]
        %v229 = vld [vmem:[%s188 + $0x8] sm:$0xff]
        %v230 = vld [vmem:[%s178] sm:$0xff]
        %v231 = vld [vmem:[%s178 + $0x8] sm:$0xff]
        %v232 = vld [vmem:[%s178 + $0x10] sm:$0xff]
        %v233 = vld [vmem:[%s178 + $0x18] sm:$0xff]
        %v234 = vadd.f32 %v230, %v228
        %v235 = vadd.f32 %v231, %v228
        %v236 = vadd.f32 %v232, %v229
        %v237 = vadd.f32 %v233, %v229
        %238 = vst [vmem:[%s214] sm:$0xff] %v234
        %239 = vst [vmem:[%s214 + $0x8] sm:$0xff] %v235
        %240 = vst [vmem:[%s214 + $0x10] sm:$0xff] %v236
        %241 = vst [vmem:[%s214 + $0x18] sm:$0xff] %v237
        %s242 = sand.u32 %s82, 1
        %s243 = scalar_lea.sflag [#allocation4], %s242
        %s244 = sand.u32 %s82, 1
        %s245 = smul.addr %s244, 32
        %s246 = scalar_lea.vmem [#allocation7], %s245
        // Predicated region
        $region37: #{tpu_custom_call.1} parent=27 // pred_check
          %p247 = pneg %p92
        $region38: #{tpu_custom_call.1} parent=27 // pred_check_branch
          %249 = sbr.rel (%p247) target = $region40
        $region39: #{tpu_custom_call.1} parent=27 // pred_region
          %s250 = smul.u32 2, %s22
          %s251 = ssub.s32 5, %s250
          %p252 = scmp.lt.s32.totalorder %s251, 2
          %s253 = scalar_select %p252, %s251, 2
          %s254 = smul.u32 8, %s253
          %s255 = smul.u32 %s254, 2
          %s256 = ssub.s32 32, %s255
          %s257 = sshll.u32 %s256, 4
          %258 = vsyncadd %s243, %s257
          %p259 = scmp.ne.s32.totalorder 0, %s255
          %s260 = smul.addr %s250, 2
          %s261 = smul.addr %s260, 8
          %s262 = scalar_lea.hbm %s2, %s261
          %s263 = smul.u32 16, %s253
          %s264 = sshll.u32 %s246, 4
          %s265 = int_to_ptr.vmem [resolvable:$true] %s264
          %s266 = sshll.u32 %s262, 4
          %s267 = int_to_ptr.hbm [resolvable:$true] %s266
          %s268 = sshll.u32 %s263, 4
          %272 = dma.vmem_to_hbm [thread:$0]  (%p259), %s265, %s268, %s267, %s243, 256, 256, 16
        $region40: #{tpu_custom_call.1} parent=27 // pred_fallthru
          _
      $region28: #{tpu_custom_call.1} parent=5 // pred_fallthru
        _
      %p273 = scmp.le.s32.totalorder 2, %s17
      // Predicated region
      $region41: #{tpu_custom_call.1} parent=5 // pred_check
        %p274 = pneg %p273
      $region42: #{tpu_custom_call.1} parent=5 // pred_check_branch
        %276 = sbr.rel (%p274) target = $region44
      $region43: #{tpu_custom_call.1} parent=5 // pred_region
        %s277 = ssub.s32 %s17, 2
        // Predicated region
        $region45: #{tpu_custom_call.1} parent=43 // pred_check
          %p278 = pneg %p98
        $region46: #{tpu_custom_call.1} parent=43 // pred_check_branch
          %280 = sbr.rel (%p278) target = $region48
        $region47: #{tpu_custom_call.1} parent=43 // pred_region
          %s281 = sand.u32 %s83, 1
          %s282 = scalar_lea.sflag [#allocation4], %s281
          %s283 = sand.u32 %s83, 1
          %s284 = smul.addr %s283, 32
          %s285 = scalar_lea.vmem [#allocation7], %s284
          %287 = dma.done %s282, 512
        $region48: #{tpu_custom_call.1} parent=43 // pred_fallthru
          _
      $region44: #{tpu_custom_call.1} parent=5 // pred_fallthru
        _
    $region6: #{tpu_custom_call.1} parent=1 // loop_footer
      %s21 = sadd.s32 1, %s17
    $region7: #{tpu_custom_call.1} parent=1 // loop_footer_branch
      %16 = sbr.rel target = $region3
    $region8: #{tpu_custom_call.1} parent=1 // loop_exit
      _
    %288 = vsyncpa [#allocation3], 1
    %s289 = scalar_lea.sflag [#allocation3], 1
    %290 = vsyncpa %s289, 1
    %291 = vsyncpa [#allocation6], 1
    %s292 = scalar_lea.sflag [#allocation6], 1
    %293 = vsyncpa %s292, 1
    %294 = vsyncpa [#allocation4], 1
    %s295 = scalar_lea.sflag [#allocation4], 1
    %296 = vsyncpa %s295, 1

</llo_original>
